<compile_context>
chip_gen: v6e
topology: v6e:2x2x1
jax: 0.10.0
libtpu: 0.0.40
codegen_flags: <defaults>
</compile_context>

<pallas_src>
import numpy as np
import jax
import jax.numpy as jnp
from jax.experimental import pallas as pl
from jax.experimental.pallas import tpu as pltpu


def _round_up(x, m):
    return ((x + m - 1) // m) * m


def make_network_kernel(input_dim, n_frequencies, n_layers):
    """n_layers = n_hidden_layers + 1 (the final output Linear)."""

    def kernel(x_ref, freq_ref, w0s_ref, w0c_ref, b0_ref, *refs):
        out_ref = refs[-1]
        wb_refs = refs[:-1]                       # (w1, b1, w2, b2, ...)
        x = x_ref[...]                            # (tb, input_dim) f32
        freq = freq_ref[...]                      # (1, n_frequencies) f32

        # Fused FrequencyEncoding phase: column (d*F + k) of v is
        # x[:, d] * freq[k]  (same ordering as
        # x.unsqueeze(2).repeat(1,1,F).view(B,-1) * frequencies).
        pieces = [x[:, d:d + 1] * freq for d in range(input_dim)]
        v = pieces[0] if input_dim == 1 else jnp.concatenate(pieces, axis=1)
        s = jnp.sin(v)                            # (tb, input_dim * F)
        c = jnp.cos(v)                            # (tb, input_dim * F)

        # First Linear with the sin/cos concat folded into two matmuls:
        #   cat([sin, cos], 1) @ W0  ==  sin @ W0[:dF] + cos @ W0[dF:]
        h = (jnp.dot(s, w0s_ref[...], preferred_element_type=jnp.float32)
             + jnp.dot(c, w0c_ref[...], preferred_element_type=jnp.float32)
             + b0_ref[...])
        if n_layers > 1:                          # ReLU after every hidden layer
            h = jnp.maximum(h, 0.0)

        # Remaining layers: ReLU after hidden layers, none after the output.
        for l in range(n_layers - 1):
            w = wb_refs[2 * l][...]
            b = wb_refs[2 * l + 1][...]
            h = jnp.dot(h, w, preferred_element_type=jnp.float32) + b
            if l < n_layers - 2:
                h = jnp.maximum(h, 0.0)

        out_ref[...] = h.astype(out_ref.dtype)

    return kernel


def network_with_encoding_forward(x, params, *, n_frequencies, freq_factor=1,
                                  tile_b=512):
    """Pallas-backed NetworkWithEncoding.forward.

    x:      (B, input_dim) float32
    params: list of (w, b), w: (d_in, d_out), b: (d_out,); the first layer
            consumes the 2*input_dim*n_frequencies-wide encoding.
    """
    B, input_dim = x.shape
    n_layers = len(params)
    output_dim = params[-1][0].shape[1]
    enc_half = input_dim * n_frequencies

    # Batch tiling: sublane-aligned tile, padded batch, "parallel" grid axis.
    tile_b = min(tile_b, _round_up(B, 8))
    B_pad = _round_up(B, tile_b)
    if B_pad != B:
        x = jnp.zeros((B_pad, input_dim), x.dtype).at[:B, :].set(x)

    freq_row = jnp.asarray(
        [float(2.0 ** k) * np.pi * freq_factor for k in range(n_frequencies)],
        dtype=jnp.float32,
    ).reshape(1, n_frequencies)

    # Split the first layer weight into its sin-rows / cos-rows once, host side.
    w0, b0 = params[0]
    w0_sin = w0[:enc_half, :]
    w0_cos = w0[enc_half:, :]
    b0_2d = b0.reshape(1, -1)

    flat_args = [x, freq_row, w0_sin, w0_cos, b0_2d]
    in_specs = [
        pl.BlockSpec((tile_b, input_dim), lambda i: (i, 0)),
        pl.BlockSpec((1, n_frequencies), lambda i: (0, 0)),
        pl.BlockSpec(w0_sin.shape, lambda i: (0, 0)),   # weights stay resident
        pl.BlockSpec(w0_cos.shape, lambda i: (0, 0)),
        pl.BlockSpec(b0_2d.shape, lambda i: (0, 0)),
    ]
    for (w, b) in params[1:]:
        b2 = b.reshape(1, -1)
        flat_args += [w, b2]
        in_specs += [
            pl.BlockSpec(w.shape, lambda i: (0, 0)),
            pl.BlockSpec(b2.shape, lambda i: (0, 0)),
        ]

    kernel = make_network_kernel(input_dim, n_frequencies, n_layers)
    grid = (B_pad // tile_b,)

    out = pl.pallas_call(
        kernel,
        grid=grid,
        in_specs=in_specs,
        out_specs=pl.BlockSpec((tile_b, output_dim), lambda i: (i, 0)),
        out_shape=jax.ShapeDtypeStruct((B_pad, output_dim), jnp.float32),
        compiler_params=pltpu.CompilerParams(
            dimension_semantics=("parallel",)),
    )(*flat_args)
    return out[:B]


def network_ref(x, params, input_dim, n_frequencies, freq_factor=1):
    """Pure-numpy reference mirroring the PyTorch NetworkWithEncoding.forward."""
    x = np.asarray(x, np.float32)
    freqs = np.array(
        [np.power(2.0, k) * np.pi * freq_factor for k in range(n_frequencies)],
        dtype=np.float32,
    )
    frequencies = np.tile(freqs, input_dim)                 # (input_dim * F,)
    expanded = np.repeat(x, n_frequencies, axis=1)          # (B, input_dim * F)
    e = np.concatenate(
        [np.sin(expanded * frequencies[None, :]),
         np.cos(expanded * frequencies[None, :])], axis=1)
    h = e
    n_layers = len(params)
    for l, (w, b) in enumerate(params):
        h = h @ np.asarray(w, np.float32) + np.asarray(b, np.float32).reshape(1, -1)
        if l < n_layers - 1:
            h = np.maximum(h, 0.0)
    return h


if __name__ == "__main__":
    input_dim = 4
    n_frequencies = 8
    hidden_dim = 32
    output_dim = 3
    n_hidden_layers = 3
    freq_factor = 1
    B = 2

    enc_dim = input_dim * n_frequencies * 2
    layer_dims = ([(enc_dim, hidden_dim)]
                  + [(hidden_dim, hidden_dim)] * (n_hidden_layers - 1)
                  + [(hidden_dim, output_dim)])

    key = jax.random.PRNGKey(0)
    keys = jax.random.split(key, 2 * len(layer_dims) + 1)
    x = jax.random.uniform(keys[0], (B, input_dim), dtype=jnp.float32)

    params = []
    for li, (din, dout) in enumerate(layer_dims):
        w = jax.random.normal(keys[1 + 2 * li], (din, dout), jnp.float32) / np.sqrt(din)
        b = 0.01 * jax.random.normal(keys[2 + 2 * li], (dout,), jnp.float32)
        params.append((w, b))

    y = network_with_encoding_forward(
        x, params, n_frequencies=n_frequencies, freq_factor=freq_factor)
    y = jax.block_until_ready(y)

    ref = network_ref(
        np.asarray(x),
        [(np.asarray(w), np.asarray(b)) for (w, b) in params],
        input_dim, n_frequencies, freq_factor)
    np.testing.assert_allclose(np.asarray(y), ref, rtol=3e-2, atol=3e-2)

    print("KERNEL_OK")
</pallas_src>

<mosaic_0001>
module attributes {stable_mosaic.version = 11 : i64} {
  func.func @kernel(%arg0: i32, %arg1: memref<8x4xf32, #tpu.memory_space<vmem>>, %arg2: memref<1x8xf32, #tpu.memory_space<vmem>>, %arg3: memref<32x32xf32, #tpu.memory_space<vmem>>, %arg4: memref<32x32xf32, #tpu.memory_space<vmem>>, %arg5: memref<1x32xf32, #tpu.memory_space<vmem>>, %arg6: memref<32x32xf32, #tpu.memory_space<vmem>>, %arg7: memref<1x32xf32, #tpu.memory_space<vmem>>, %arg8: memref<32x32xf32, #tpu.memory_space<vmem>>, %arg9: memref<1x32xf32, #tpu.memory_space<vmem>>, %arg10: memref<32x3xf32, #tpu.memory_space<vmem>>, %arg11: memref<1x3xf32, #tpu.memory_space<vmem>>, %arg12: memref<8x3xf32, #tpu.memory_space<vmem>>) attributes {dimension_semantics = [#tpu.dimension_semantics<parallel>], iteration_bounds = array<i64: 1>, scalar_prefetch = 0 : i64, scratch_operands = 0 : i64, tpu.core_type = #tpu.core_type<tc>, window_params = [{transform_indices = @transform_0, window_bounds = array<i64: 8, 4>}, {pipeline_mode = #tpu.pipeline_mode<synchronous>, transform_indices = @transform_1, window_bounds = array<i64: 1, 8>}, {pipeline_mode = #tpu.pipeline_mode<synchronous>, transform_indices = @transform_2, window_bounds = array<i64: 32, 32>}, {pipeline_mode = #tpu.pipeline_mode<synchronous>, transform_indices = @transform_3, window_bounds = array<i64: 32, 32>}, {pipeline_mode = #tpu.pipeline_mode<synchronous>, transform_indices = @transform_4, window_bounds = array<i64: 1, 32>}, {pipeline_mode = #tpu.pipeline_mode<synchronous>, transform_indices = @transform_5, window_bounds = array<i64: 32, 32>}, {pipeline_mode = #tpu.pipeline_mode<synchronous>, transform_indices = @transform_6, window_bounds = array<i64: 1, 32>}, {pipeline_mode = #tpu.pipeline_mode<synchronous>, transform_indices = @transform_7, window_bounds = array<i64: 32, 32>}, {pipeline_mode = #tpu.pipeline_mode<synchronous>, transform_indices = @transform_8, window_bounds = array<i64: 1, 32>}, {pipeline_mode = #tpu.pipeline_mode<synchronous>, transform_indices = @transform_9, window_bounds = array<i64: 32, 3>}, {pipeline_mode = #tpu.pipeline_mode<synchronous>, transform_indices = @transform_10, window_bounds = array<i64: 1, 3>}, {transform_indices = @transform_11, window_bounds = array<i64: 8, 3>}]} {
    %c0 = arith.constant 0 : index
    %c0_0 = arith.constant 0 : index
    %0 = vector.load %arg1[%c0, %c0_0] : memref<8x4xf32, #tpu.memory_space<vmem>>, vector<8x4xf32>
    %c0_1 = arith.constant 0 : index
    %c0_2 = arith.constant 0 : index
    %1 = vector.load %arg2[%c0_1, %c0_2] : memref<1x8xf32, #tpu.memory_space<vmem>>, vector<1x8xf32>
    %2 = vector.extract_strided_slice %0 {offsets = [0, 0], sizes = [8, 1], strides = [1, 1]} : vector<8x4xf32> to vector<8x1xf32>
    %3 = vector.broadcast %2 : vector<8x1xf32> to vector<8x8xf32>
    %4 = vector.broadcast %1 : vector<1x8xf32> to vector<8x8xf32>
    %5 = arith.mulf %3, %4 : vector<8x8xf32>
    %6 = vector.extract_strided_slice %0 {offsets = [0, 1], sizes = [8, 1], strides = [1, 1]} : vector<8x4xf32> to vector<8x1xf32>
    %7 = vector.broadcast %6 : vector<8x1xf32> to vector<8x8xf32>
    %8 = vector.broadcast %1 : vector<1x8xf32> to vector<8x8xf32>
    %9 = arith.mulf %7, %8 : vector<8x8xf32>
    %10 = vector.extract_strided_slice %0 {offsets = [0, 2], sizes = [8, 1], strides = [1, 1]} : vector<8x4xf32> to vector<8x1xf32>
    %11 = vector.broadcast %10 : vector<8x1xf32> to vector<8x8xf32>
    %12 = vector.broadcast %1 : vector<1x8xf32> to vector<8x8xf32>
    %13 = arith.mulf %11, %12 : vector<8x8xf32>
    %14 = vector.extract_strided_slice %0 {offsets = [0, 3], sizes = [8, 1], strides = [1, 1]} : vector<8x4xf32> to vector<8x1xf32>
    %15 = vector.broadcast %14 : vector<8x1xf32> to vector<8x8xf32>
    %16 = vector.broadcast %1 : vector<1x8xf32> to vector<8x8xf32>
    %17 = arith.mulf %15, %16 : vector<8x8xf32>
    %18 = tpu.concatenate %5, %9, %13, %17 in 1 : vector<8x8xf32>, vector<8x8xf32>, vector<8x8xf32>, vector<8x8xf32> -> vector<8x32xf32>
    %19 = math.sin %18 : vector<8x32xf32>
    %20 = math.cos %18 : vector<8x32xf32>
    %c0_3 = arith.constant 0 : index
    %c0_4 = arith.constant 0 : index
    %21 = vector.load %arg3[%c0_3, %c0_4] : memref<32x32xf32, #tpu.memory_space<vmem>>, vector<32x32xf32>
    %cst = arith.constant dense<0.000000e+00> : vector<8x32xf32>
    %22 = tpu.matmul %19, %21, %cst {dimension_numbers = #tpu.dot_dimension_numbers<[1], [0], [0], [1], [0, 0, 1, 1], [], []>} : vector<8x32xf32>, vector<32x32xf32>, vector<8x32xf32> -> vector<8x32xf32>
    %c0_5 = arith.constant 0 : index
    %c0_6 = arith.constant 0 : index
    %23 = vector.load %arg4[%c0_5, %c0_6] : memref<32x32xf32, #tpu.memory_space<vmem>>, vector<32x32xf32>
    %cst_7 = arith.constant dense<0.000000e+00> : vector<8x32xf32>
    %24 = tpu.matmul %20, %23, %cst_7 {dimension_numbers = #tpu.dot_dimension_numbers<[1], [0], [0], [1], [0, 0, 1, 1], [], []>} : vector<8x32xf32>, vector<32x32xf32>, vector<8x32xf32> -> vector<8x32xf32>
    %25 = arith.addf %22, %24 : vector<8x32xf32>
    %c0_8 = arith.constant 0 : index
    %c0_9 = arith.constant 0 : index
    %26 = vector.load %arg5[%c0_8, %c0_9] : memref<1x32xf32, #tpu.memory_space<vmem>>, vector<1x32xf32>
    %27 = vector.broadcast %26 : vector<1x32xf32> to vector<8x32xf32>
    %28 = arith.addf %25, %27 : vector<8x32xf32>
    %cst_10 = arith.constant 0.000000e+00 : f32
    %29 = vector.broadcast %cst_10 : f32 to vector<8x32xf32>
    %30 = arith.maximumf %28, %29 : vector<8x32xf32>
    %c0_11 = arith.constant 0 : index
    %c0_12 = arith.constant 0 : index
    %31 = vector.load %arg6[%c0_11, %c0_12] : memref<32x32xf32, #tpu.memory_space<vmem>>, vector<32x32xf32>
    %c0_13 = arith.constant 0 : index
    %c0_14 = arith.constant 0 : index
    %32 = vector.load %arg7[%c0_13, %c0_14] : memref<1x32xf32, #tpu.memory_space<vmem>>, vector<1x32xf32>
    %cst_15 = arith.constant dense<0.000000e+00> : vector<8x32xf32>
    %33 = tpu.matmul %30, %31, %cst_15 {dimension_numbers = #tpu.dot_dimension_numbers<[1], [0], [0], [1], [0, 0, 1, 1], [], []>} : vector<8x32xf32>, vector<32x32xf32>, vector<8x32xf32> -> vector<8x32xf32>
    %34 = vector.broadcast %32 : vector<1x32xf32> to vector<8x32xf32>
    %35 = arith.addf %33, %34 : vector<8x32xf32>
    %cst_16 = arith.constant 0.000000e+00 : f32
    %36 = vector.broadcast %cst_16 : f32 to vector<8x32xf32>
    %37 = arith.maximumf %35, %36 : vector<8x32xf32>
    %c0_17 = arith.constant 0 : index
    %c0_18 = arith.constant 0 : index
    %38 = vector.load %arg8[%c0_17, %c0_18] : memref<32x32xf32, #tpu.memory_space<vmem>>, vector<32x32xf32>
    %c0_19 = arith.constant 0 : index
    %c0_20 = arith.constant 0 : index
    %39 = vector.load %arg9[%c0_19, %c0_20] : memref<1x32xf32, #tpu.memory_space<vmem>>, vector<1x32xf32>
    %cst_21 = arith.constant dense<0.000000e+00> : vector<8x32xf32>
    %40 = tpu.matmul %37, %38, %cst_21 {dimension_numbers = #tpu.dot_dimension_numbers<[1], [0], [0], [1], [0, 0, 1, 1], [], []>} : vector<8x32xf32>, vector<32x32xf32>, vector<8x32xf32> -> vector<8x32xf32>
    %41 = vector.broadcast %39 : vector<1x32xf32> to vector<8x32xf32>
    %42 = arith.addf %40, %41 : vector<8x32xf32>
    %cst_22 = arith.constant 0.000000e+00 : f32
    %43 = vector.broadcast %cst_22 : f32 to vector<8x32xf32>
    %44 = arith.maximumf %42, %43 : vector<8x32xf32>
    %c0_23 = arith.constant 0 : index
    %c0_24 = arith.constant 0 : index
    %45 = vector.load %arg10[%c0_23, %c0_24] : memref<32x3xf32, #tpu.memory_space<vmem>>, vector<32x3xf32>
    %c0_25 = arith.constant 0 : index
    %c0_26 = arith.constant 0 : index
    %46 = vector.load %arg11[%c0_25, %c0_26] : memref<1x3xf32, #tpu.memory_space<vmem>>, vector<1x3xf32>
    %cst_27 = arith.constant dense<0.000000e+00> : vector<8x3xf32>
    %47 = tpu.matmul %44, %45, %cst_27 {dimension_numbers = #tpu.dot_dimension_numbers<[1], [0], [0], [1], [0, 0, 1, 1], [], []>} : vector<8x32xf32>, vector<32x3xf32>, vector<8x3xf32> -> vector<8x3xf32>
    %48 = vector.broadcast %46 : vector<1x3xf32> to vector<8x3xf32>
    %49 = arith.addf %47, %48 : vector<8x3xf32>
    %c0_28 = arith.constant 0 : index
    %c0_29 = arith.constant 0 : index
    %50 = vector.load %arg12[%c0_28, %c0_29] : memref<8x3xf32, #tpu.memory_space<vmem>>, vector<8x3xf32>
    tpu.vector_store %arg12[%c0_28, %c0_29], %49 {strides = array<i32>} : memref<8x3xf32, #tpu.memory_space<vmem>>, vector<8x3xf32>,
    return
  }
  func.func @transform_0(%arg0: i32) -> (i32, i32) {
    %c0_i32 = arith.constant 0 : i32
    %c0_i32_0 = arith.constant 0 : i32
    return %arg0, %c0_i32 : i32, i32
  }
  func.func @transform_1(%arg0: i32) -> (i32, i32) {
    %c0_i32 = arith.constant 0 : i32
    %c0_i32_0 = arith.constant 0 : i32
    %c0_i32_1 = arith.constant 0 : i32
    return %c0_i32, %c0_i32_0 : i32, i32
  }
  func.func @transform_2(%arg0: i32) -> (i32, i32) {
    %c0_i32 = arith.constant 0 : i32
    %c0_i32_0 = arith.constant 0 : i32
    %c0_i32_1 = arith.constant 0 : i32
    return %c0_i32, %c0_i32_0 : i32, i32
  }
  func.func @transform_3(%arg0: i32) -> (i32, i32) {
    %c0_i32 = arith.constant 0 : i32
    %c0_i32_0 = arith.constant 0 : i32
    %c0_i32_1 = arith.constant 0 : i32
    return %c0_i32, %c0_i32_0 : i32, i32
  }
  func.func @transform_4(%arg0: i32) -> (i32, i32) {
    %c0_i32 = arith.constant 0 : i32
    %c0_i32_0 = arith.constant 0 : i32
    %c0_i32_1 = arith.constant 0 : i32
    return %c0_i32, %c0_i32_0 : i32, i32
  }
  func.func @transform_5(%arg0: i32) -> (i32, i32) {
    %c0_i32 = arith.constant 0 : i32
    %c0_i32_0 = arith.constant 0 : i32
    %c0_i32_1 = arith.constant 0 : i32
    return %c0_i32, %c0_i32_0 : i32, i32
  }
  func.func @transform_6(%arg0: i32) -> (i32, i32) {
    %c0_i32 = arith.constant 0 : i32
    %c0_i32_0 = arith.constant 0 : i32
    %c0_i32_1 = arith.constant 0 : i32
    return %c0_i32, %c0_i32_0 : i32, i32
  }
  func.func @transform_7(%arg0: i32) -> (i32, i32) {
    %c0_i32 = arith.constant 0 : i32
    %c0_i32_0 = arith.constant 0 : i32
    %c0_i32_1 = arith.constant 0 : i32
    return %c0_i32, %c0_i32_0 : i32, i32
  }
  func.func @transform_8(%arg0: i32) -> (i32, i32) {
    %c0_i32 = arith.constant 0 : i32
    %c0_i32_0 = arith.constant 0 : i32
    %c0_i32_1 = arith.constant 0 : i32
    return %c0_i32, %c0_i32_0 : i32, i32
  }
  func.func @transform_9(%arg0: i32) -> (i32, i32) {
    %c0_i32 = arith.constant 0 : i32
    %c0_i32_0 = arith.constant 0 : i32
    %c0_i32_1 = arith.constant 0 : i32
    return %c0_i32, %c0_i32_0 : i32, i32
  }
  func.func @transform_10(%arg0: i32) -> (i32, i32) {
    %c0_i32 = arith.constant 0 : i32
    %c0_i32_0 = arith.constant 0 : i32
    %c0_i32_1 = arith.constant 0 : i32
    return %c0_i32, %c0_i32_0 : i32, i32
  }
  func.func @transform_11(%arg0: i32) -> (i32, i32) {
    %c0_i32 = arith.constant 0 : i32
    %c0_i32_0 = arith.constant 0 : i32
    return %arg0, %c0_i32 : i32, i32
  }
}

</mosaic_0001>

<llo_original>
// kernel: tpu_custom_call.1
$region0: #{tpu_custom_call.1}
  #allocation0 [shape = 'u32[]', space=smem, size = 0x4, offset = 0x4, fixed_abs, tag = 'smem constant byte address 0x4 - core index']
  #allocation1 [shape = 'u32[144,128]{1,0:T(1,128)}', space=vmem, size = 0x12000, scoped, tag = 'internal scratch']
  %s0 = inlined_call_operand.vmem [shape: f32[8,4], index: 0, kind: input, shape index: {}]
  %s1 = inlined_call_operand.vmem [shape: f32[1,8], index: 1, kind: input, shape index: {}]
  %s2 = inlined_call_operand.vmem [shape: f32[32,32], index: 2, kind: input, shape index: {}]
  %s3 = inlined_call_operand.hbm [shape: f32[32,32], index: 3, kind: input, shape index: {}]
  %s4 = inlined_call_operand.vmem [shape: f32[1,32], index: 4, kind: input, shape index: {}]
  %s5 = inlined_call_operand.hbm [shape: f32[32,32], index: 5, kind: input, shape index: {}]
  %s6 = inlined_call_operand.vmem [shape: f32[1,32], index: 6, kind: input, shape index: {}]
  %s7 = inlined_call_operand.hbm [shape: f32[32,32], index: 7, kind: input, shape index: {}]
  %s8 = inlined_call_operand.vmem [shape: f32[1,32], index: 8, kind: input, shape index: {}]
  %s9 = inlined_call_operand.vmem [shape: f32[32,3], index: 9, kind: input, shape index: {}]
  %s10 = inlined_call_operand.vmem [shape: f32[1,3], index: 10, kind: input, shape index: {}]
  %s11 = inlined_call_operand.vmem [shape: f32[8,3], index: 11, kind: output, shape index: {}]
  %s12 = sld [smem:[#allocation0]]
  $region66: #{tpu_custom_call.1} parent=0
    _
  %s14 = ssub.s32 1, %s12
  %s15 = scalar_select 0, %s14, %s12
  $region1: #{tpu_custom_call.1} parent=0
    #allocation2 [shape = 'u8[16384]{0}', space=vmem, size = 0x4000, scoped, tag = 'input window, operand 3, single buffered']
    #allocation3 [shape = 's32[1]{0}', space=sflag, size = 0x4, scoped, tag = 'scoped memory for tpu_custom_call.1']
    #allocation4 [shape = 'u8[16384]{0}', space=vmem, size = 0x4000, scoped, tag = 'input window, operand 5, single buffered']
    #allocation5 [shape = 's32[1]{0}', space=sflag, size = 0x4, scoped, tag = 'scoped memory for tpu_custom_call.1']
    #allocation6 [shape = 'u8[16384]{0}', space=vmem, size = 0x4000, scoped, tag = 'input window, operand 7, single buffered']
    %16 = vsyncpa [#allocation3], 0
    %17 = vsyncpa [#allocation5], 0
    // Predicated region
    $region2: #{tpu_custom_call.1} parent=1 // pred_check
      _
    $region3: #{tpu_custom_call.1} parent=1 // pred_check_branch
      %19 = sbr.rel (0) target = $region5
    $region4: #{tpu_custom_call.1} parent=1 // pred_region
      _
    $region5: #{tpu_custom_call.1} parent=1 // pred_fallthru
      _
    // Predicated region
    $region6: #{tpu_custom_call.1} parent=1 // pred_check
      _
    $region7: #{tpu_custom_call.1} parent=1 // pred_check_branch
      %21 = sbr.rel (0) target = $region9
    $region8: #{tpu_custom_call.1} parent=1 // pred_region
      _
    $region9: #{tpu_custom_call.1} parent=1 // pred_fallthru
      _
    // Predicated region
    $region10: #{tpu_custom_call.1} parent=1 // pred_check
      _
    $region11: #{tpu_custom_call.1} parent=1 // pred_check_branch
      %23 = sbr.rel (0) target = $region13
    $region12: #{tpu_custom_call.1} parent=1 // pred_region
      _
    $region13: #{tpu_custom_call.1} parent=1 // pred_fallthru
      _
    // Predicated region
    $region14: #{tpu_custom_call.1} parent=1 // pred_check
      _
    $region15: #{tpu_custom_call.1} parent=1 // pred_check_branch
      %25 = sbr.rel (0) target = $region17
    $region16: #{tpu_custom_call.1} parent=1 // pred_region
      %s27 = ssub.s32 512, 512
      %28 = vsyncadd [#allocation3], %s27
      %s29 = sshll.u32 [#allocation2], 4
      %s30 = int_to_ptr.vmem [resolvable:$true] %s29
      %35 = dma.hbm_to_vmem [thread:$0]  %s3, 512, %s30, [#allocation3], 128, 128, 8
    $region17: #{tpu_custom_call.1} parent=1 // pred_fallthru
      _
    // Predicated region
    $region18: #{tpu_custom_call.1} parent=1 // pred_check
      _
    $region19: #{tpu_custom_call.1} parent=1 // pred_check_branch
      %37 = sbr.rel (0) target = $region21
    $region20: #{tpu_custom_call.1} parent=1 // pred_region
      _
    $region21: #{tpu_custom_call.1} parent=1 // pred_fallthru
      _
    // Predicated region
    $region22: #{tpu_custom_call.1} parent=1 // pred_check
      _
    $region23: #{tpu_custom_call.1} parent=1 // pred_check_branch
      %39 = sbr.rel (0) target = $region25
    $region24: #{tpu_custom_call.1} parent=1 // pred_region
      %s41 = ssub.s32 512, 512
      %42 = vsyncadd [#allocation5], %s41
      %s43 = sshll.u32 [#allocation4], 4
      %s44 = int_to_ptr.vmem [resolvable:$true] %s43
      %49 = dma.hbm_to_vmem [thread:$0]  %s5, 512, %s44, [#allocation5], 128, 128, 8
    $region25: #{tpu_custom_call.1} parent=1 // pred_fallthru
      _
    // Predicated region
    $region26: #{tpu_custom_call.1} parent=1 // pred_check
      _
    $region27: #{tpu_custom_call.1} parent=1 // pred_check_branch
      %51 = sbr.rel (0) target = $region29
    $region28: #{tpu_custom_call.1} parent=1 // pred_region
      _
    $region29: #{tpu_custom_call.1} parent=1 // pred_fallthru
      _
    // Predicated region
    $region30: #{tpu_custom_call.1} parent=1 // pred_check
      _
    $region31: #{tpu_custom_call.1} parent=1 // pred_check_branch
      %53 = sbr.rel (0) target = $region33
    $region32: #{tpu_custom_call.1} parent=1 // pred_region
      %s55 = ssub.s32 512, 512
      %56 = vsyncadd [#allocation5], %s55
      %s57 = sshll.u32 [#allocation6], 4
      %s58 = int_to_ptr.vmem [resolvable:$true] %s57
      %63 = dma.hbm_to_vmem [thread:$0]  %s7, 512, %s58, [#allocation5], 128, 128, 8
    $region33: #{tpu_custom_call.1} parent=1 // pred_fallthru
      _
    // Predicated region
    $region34: #{tpu_custom_call.1} parent=1 // pred_check
      _
    $region35: #{tpu_custom_call.1} parent=1 // pred_check_branch
      %65 = sbr.rel (0) target = $region37
    $region36: #{tpu_custom_call.1} parent=1 // pred_region
      _
    $region37: #{tpu_custom_call.1} parent=1 // pred_fallthru
      _
    // Predicated region
    $region38: #{tpu_custom_call.1} parent=1 // pred_check
      _
    $region39: #{tpu_custom_call.1} parent=1 // pred_check_branch
      %67 = sbr.rel (0) target = $region41
    $region40: #{tpu_custom_call.1} parent=1 // pred_region
      _
    $region41: #{tpu_custom_call.1} parent=1 // pred_fallthru
      _
    // Predicated region
    $region42: #{tpu_custom_call.1} parent=1 // pred_check
      _
    $region43: #{tpu_custom_call.1} parent=1 // pred_check_branch
      %69 = sbr.rel (0) target = $region45
    $region44: #{tpu_custom_call.1} parent=1 // pred_region
      _
    $region45: #{tpu_custom_call.1} parent=1 // pred_fallthru
      _
    // Predicated region
    $region46: #{tpu_custom_call.1} parent=1 // pred_check
      _
    $region47: #{tpu_custom_call.1} parent=1 // pred_check_branch
      %71 = sbr.rel (0) target = $region49
    $region48: #{tpu_custom_call.1} parent=1 // pred_region
      %72 = dma.done [#allocation3], 512
    $region49: #{tpu_custom_call.1} parent=1 // pred_fallthru
      _
    // Predicated region
    $region50: #{tpu_custom_call.1} parent=1 // pred_check
      _
    $region51: #{tpu_custom_call.1} parent=1 // pred_check_branch
      %74 = sbr.rel (0) target = $region53
    $region52: #{tpu_custom_call.1} parent=1 // pred_region
      %75 = dma.done [#allocation5], 512
    $region53: #{tpu_custom_call.1} parent=1 // pred_fallthru
      _
    // Predicated region
    $region54: #{tpu_custom_call.1} parent=1 // pred_check
      _
    $region55: #{tpu_custom_call.1} parent=1 // pred_check_branch
      %77 = sbr.rel (0) target = $region57
    $region56: #{tpu_custom_call.1} parent=1 // pred_region
      %78 = dma.done [#allocation5], 512
    $region57: #{tpu_custom_call.1} parent=1 // pred_fallthru
      _
    %v79 = vld [vmem:[%s0] sm:$0xff]
    %v80 = vld [vmem:[%s1] sm:$0x1]
    %82 = vset.pattern.permute.xlu0 0
    %83 = vperm.xlu0 %82, %v79
    %v84 = vpop.permute.xlu0 %83
    %v87 = vlaneseq
    %v88 = vshrl.u32 %v87, 7
    %v89 = vsub.s32 0, %v88
    %v90 = vrot.slane %v80, %v89
    %v92 = vmul.f32 %v84, %v90
    %93 = vset.pattern.permute.xlu0 1
    %94 = vperm.xlu0 %93, %v79
    %v95 = vpop.permute.xlu0 %94
    %v97 = vmul.f32 %v95, %v90
    %98 = vset.pattern.permute.xlu0 2
    %99 = vperm.xlu0 %98, %v79
    %v100 = vpop.permute.xlu0 %99
    %v102 = vmul.f32 %v100, %v90
    %103 = vset.pattern.permute.xlu0 3
    %104 = vperm.xlu0 %103, %v79
    %v105 = vpop.permute.xlu0 %104
    %v107 = vmul.f32 %v105, %v90
    %109 = vrot.lane.b32.xlu0 %v97, 8
    %v110 = vpop.permute.xlu0 %109
    %113 = vrot.lane.b32.xlu0 %v102, 16
    %v114 = vpop.permute.xlu0 %113
    %117 = vrot.lane.b32.xlu0 %v107, 24
    %v118 = vpop.permute.xlu0 %117
    %vm120 = vcmask 64512
    %v121 = vsel %vm120, %v92, %v110
    %vm122 = vcmask 130048
    %v123 = vsel %vm122, %v121, %v114
    %vm124 = vcmask 195584
    %v125 = vsel %vm124, %v123, %v118
    %v126 = vand.u32 2147483647, %v125
    %vm127 = vcmp.le.f32.partialorder %v126, 0.7853982
    %vm128 = vcmp.lt.s32.totalorder %v125, 0
    %v129 = vand.u32 %v125, 2139095040
    %v130 = vshrl.u32 %v129, 23
    %v131 = vsub.s32 %v130, 127
    %v132 = vand.u32 2147483647, %v125
    %v133 = vand.u32 %v132, 8388607
    %v134 = vor.u32 %v133, 8388608
    %v135 = vsub.s32 0, %v134
    %v136 = vadd.s32 %v131, 1
    %vm137 = vcmp.gt.s32.totalorder %v136, 0
    %v138 = vsel %vm137, %v136, 0
    %v139 = vshrl.u32 %v138, 5
    %v140 = vand.u32 %v138, 31
    %v141 = vsub.s32 32, %v140
    %v142 = vshrl.u32 683565275, %v141
    %v143 = vshll.u32 683565275, %v140
    %v144 = vshrl.u32 2475754826, %v141
    %v145 = vor.u32 %v143, %v144
    %v146 = vshll.u32 2475754826, %v140
    %v147 = vshrl.u32 2131351028, %v141
    %v148 = vor.u32 %v146, %v147
    %v149 = vshll.u32 2131351028, %v140
    %v150 = vshrl.u32 2102212464, %v141
    %v151 = vor.u32 %v149, %v150
    %v152 = vshll.u32 2102212464, %v140
    %v153 = vshrl.u32 920167782, %v141
    %v154 = vor.u32 %v152, %v153
    %v155 = vshll.u32 920167782, %v140
    %v156 = vshrl.u32 1326507024, %v141
    %v157 = vor.u32 %v155, %v156
    %vm158 = vcmp.lt.s32.totalorder %v139, 1
    %vm159 = vcmp.lt.s32.totalorder %v139, 2
    %vm160 = vcmp.lt.s32.totalorder %v139, 3
    %vm161 = vcmp.lt.s32.totalorder %v139, 4
    %v162 = vsel %vm158, %v142, %v145
    %v163 = vsel %vm161, %v151, 2102212464
    %v164 = vsel %vm160, %v148, %v163
    %v165 = vsel %vm159, %v162, %v164
    %v166 = vsel %vm158, %v145, %v148
    %v167 = vsel %vm161, %v154, 920167782
    %v168 = vsel %vm160, %v151, %v167
    %v169 = vsel %vm159, %v166, %v168
    %v170 = vsel %vm158, %v148, %v151
    %v171 = vsel %vm161, %v157, 1326507024
    %v172 = vsel %vm160, %v154, %v171
    %v173 = vsel %vm159, %v170, %v172
    %v174 = vshll.u32 %v134, 8
    %v175 = vmul.u32.u64.compose %v174, %v173
    %v176 = vextract.low.u32 %v175
    %v177 = vextract.high.u32 %v175
    %v178 = vmul.u32.u64.compose %v174, %v169
    %v179 = vextract.low.u32 %v178
    %v180 = vextract.high.u32 %v178
    %v181 = vmul.u32 %v174, %v165
    %v182 = vadd.s32 %v177, %v179
    %vm183 = vc.u32 %v177, %v179
    %v184 = vadd.s32 %v180, 1
    %v185 = vsel %vm183, %v184, %v180
    %v186 = vadd.s32 %v181, %v185
    %v187 = vadd.s32 %v186, 536870912
    %v188 = vshrl.u32 %v187, 30
    %v189 = vshll.u32 %v188, 30
    %v190 = vsub.s32 %v186, %v189
    %vm191 = vcmp.lt.s32.totalorder %v190, 0
    %v192 = vsub.s32 0, %v190
    %v193 = vsel %vm191, %v192, %v190
    %v194 = vclz %v193
    %v195 = vsub.s32 %v194, 2
    %vm196 = vcmp.gt.s32.totalorder 0, %v195
    %v197 = vsel %vm196, 0, %v195
    %v198 = vsub.s32 32, %v197
    %v199 = vshll.u32 %v190, %v197
    %v200 = vshrl.u32 %v182, %v198
    %v201 = vor.u32 %v199, %v200
    %v202 = vsub.s32 4294967266, %v197
    %v203 = vadd.s32 %v202, 127
    %v204 = vshll.u32 %v203, 23
    %v205 = vor.u32 4788187, %v204
    %v206 = vand.u32 2147483647, %v205
    %v208 = vcvt.s32.f32 %v201
    %v209 = vmul.f32 %v208, %v206
    %v210 = vxor.u32 %v209, 2147483648
    %v211 = vsel %vm128, %v210, %v209
    %v212 = vsub.s32 4, %v188
    %v213 = vsel %vm128, %v212, %v188
    %v214 = vsel %vm127, %v125, %v211
    %v215 = vsel %vm127, 0, %v213
    %v216 = vcosq.f32.pop %v214
    %v217 = vsinq.f32.pop %v214
    %vm218 = vweird.f32 %v125
    %v219 = vadd.s32 %v215, 3
    %v220 = vand.u32 %v219, 3
    %vm221 = vcmp.lt.s32.totalorder %v220, 2
    %vm222 = vcmp.eq.s32.totalorder %v220, 0
    %v223 = vxor.u32 %v217, 2147483648
    %v224 = vsel %vm222, %v216, %v223
    %vm225 = vcmp.eq.s32.totalorder %v220, 2
    %v226 = vxor.u32 %v216, 2147483648
    %v227 = vsel %vm225, %v226, %v217
    %v228 = vsel %vm221, %v224, %v227
    %v229 = vsel %vm218, nan, %v228
    %v230 = vand.u32 2147483647, %v125
    %vm231 = vcmp.le.f32.partialorder %v230, 0.7853982
    %vm232 = vcmp.lt.s32.totalorder %v125, 0
    %v233 = vand.u32 %v125, 2139095040
    %v234 = vshrl.u32 %v233, 23
    %v235 = vsub.s32 %v234, 127
    %v236 = vand.u32 2147483647, %v125
    %v237 = vand.u32 %v236, 8388607
    %v238 = vor.u32 %v237, 8388608
    %v239 = vsub.s32 0, %v238
    %v240 = vadd.s32 %v235, 1
    %vm241 = vcmp.gt.s32.totalorder %v240, 0
    %v242 = vsel %vm241, %v240, 0
    %v243 = vshrl.u32 %v242, 5
    %v244 = vand.u32 %v242, 31
    %v245 = vsub.s32 32, %v244
    %v246 = vshrl.u32 683565275, %v245
    %v247 = vshll.u32 683565275, %v244
    %v248 = vshrl.u32 2475754826, %v245
    %v249 = vor.u32 %v247, %v248
    %v250 = vshll.u32 2475754826, %v244
    %v251 = vshrl.u32 2131351028, %v245
    %v252 = vor.u32 %v250, %v251
    %v253 = vshll.u32 2131351028, %v244
    %v254 = vshrl.u32 2102212464, %v245
    %v255 = vor.u32 %v253, %v254
    %v256 = vshll.u32 2102212464, %v244
    %v257 = vshrl.u32 920167782, %v245
    %v258 = vor.u32 %v256, %v257
    %v259 = vshll.u32 920167782, %v244
    %v260 = vshrl.u32 1326507024, %v245
    %v261 = vor.u32 %v259, %v260
    %vm262 = vcmp.lt.s32.totalorder %v243, 1
    %vm263 = vcmp.lt.s32.totalorder %v243, 2
    %vm264 = vcmp.lt.s32.totalorder %v243, 3
    %vm265 = vcmp.lt.s32.totalorder %v243, 4
    %v266 = vsel %vm262, %v246, %v249
    %v267 = vsel %vm265, %v255, 2102212464
    %v268 = vsel %vm264, %v252, %v267
    %v269 = vsel %vm263, %v266, %v268
    %v270 = vsel %vm262, %v249, %v252
    %v271 = vsel %vm265, %v258, 920167782
    %v272 = vsel %vm264, %v255, %v271
    %v273 = vsel %vm263, %v270, %v272
    %v274 = vsel %vm262, %v252, %v255
    %v275 = vsel %vm265, %v261, 1326507024
    %v276 = vsel %vm264, %v258, %v275
    %v277 = vsel %vm263, %v274, %v276
    %v278 = vshll.u32 %v238, 8
    %v279 = vmul.u32.u64.compose %v278, %v277
    %v280 = vextract.low.u32 %v279
    %v281 = vextract.high.u32 %v279
    %v282 = vmul.u32.u64.compose %v278, %v273
    %v283 = vextract.low.u32 %v282
    %v284 = vextract.high.u32 %v282
    %v285 = vmul.u32 %v278, %v269
    %v286 = vadd.s32 %v281, %v283
    %vm287 = vc.u32 %v281, %v283
    %v288 = vadd.s32 %v284, 1
    %v289 = vsel %vm287, %v288, %v284
    %v290 = vadd.s32 %v285, %v289
    %v291 = vadd.s32 %v290, 536870912
    %v292 = vshrl.u32 %v291, 30
    %v293 = vshll.u32 %v292, 30
    %v294 = vsub.s32 %v290, %v293
    %vm295 = vcmp.lt.s32.totalorder %v294, 0
    %v296 = vsub.s32 0, %v294
    %v297 = vsel %vm295, %v296, %v294
    %v298 = vclz %v297
    %v299 = vsub.s32 %v298, 2
    %vm300 = vcmp.gt.s32.totalorder 0, %v299
    %v301 = vsel %vm300, 0, %v299
    %v302 = vsub.s32 32, %v301
    %v303 = vshll.u32 %v294, %v301
    %v304 = vshrl.u32 %v286, %v302
    %v305 = vor.u32 %v303, %v304
    %v306 = vsub.s32 4294967266, %v301
    %v307 = vadd.s32 %v306, 127
    %v308 = vshll.u32 %v307, 23
    %v309 = vor.u32 4788187, %v308
    %v310 = vand.u32 2147483647, %v309
    %v312 = vcvt.s32.f32 %v305
    %v313 = vmul.f32 %v312, %v310
    %v314 = vxor.u32 %v313, 2147483648
    %v315 = vsel %vm232, %v314, %v313
    %v316 = vsub.s32 4, %v292
    %v317 = vsel %vm232, %v316, %v292
    %v318 = vsel %vm231, %v125, %v315
    %v319 = vsel %vm231, 0, %v317
    %v320 = vcosq.f32.pop %v318
    %v321 = vsinq.f32.pop %v318
    %vm322 = vweird.f32 %v125
    %v323 = vand.u32 %v319, 3
    %vm324 = vcmp.lt.s32.totalorder %v323, 2
    %vm325 = vcmp.eq.s32.totalorder %v323, 0
    %v326 = vxor.u32 %v321, 2147483648
    %v327 = vsel %vm325, %v320, %v326
    %vm328 = vcmp.eq.s32.totalorder %v323, 2
    %v329 = vxor.u32 %v320, 2147483648
    %v330 = vsel %vm328, %v329, %v321
    %v331 = vsel %vm324, %v327, %v330
    %v332 = vsel %vm322, nan, %v331
    %v333 = vld [vmem:[%s2] sm:$0xff]
    %v334 = vld [vmem:[%s2 + $0x8] sm:$0xff]
    %v335 = vld [vmem:[%s2 + $0x10] sm:$0xff]
    %v336 = vld [vmem:[%s2 + $0x18] sm:$0xff]
    %v337 = vld [vmem:[#allocation2] sm:$0xff]
    %v338 = vld [vmem:[#allocation2 + $0x8] sm:$0xff]
    %v339 = vld [vmem:[#allocation2 + $0x10] sm:$0xff]
    %v340 = vld [vmem:[#allocation2 + $0x18] sm:$0xff]
    %vm341 = vcmask 261120
    %v343 = vsel %vm341, %v332, 0
    %345 = vmatprep.subr.mxu0 0.0
    %346 = vmatpush1.msra.mxu0 0.0
    %347 = vmatprep.subr.mxu0 0.0
    %348 = vmatpush1.msra.mxu0 0.0
    %349 = vmatprep.subr.mxu0 0.0
    %350 = vmatpush1.msra.mxu0 0.0
    %351 = vmatprep.subr.mxu0 0.0
    %352 = vmatpush1.msra.mxu0 0.0
    %353 = vmatprep.subr.mxu0 0.0
    %354 = vmatpush1.msra.mxu0 0.0
    %355 = vmatprep.subr.mxu0 0.0
    %356 = vmatpush1.msra.mxu0 0.0
    %357 = vmatprep.subr.mxu0 0.0
    %358 = vmatpush1.msra.mxu0 0.0
    %359 = vmatprep.subr.mxu0 0.0
    %360 = vmatpush1.msra.mxu0 0.0
    %361 = vmatprep.subr.mxu0 0.0
    %362 = vmatpush1.msra.mxu0 0.0
    %363 = vmatprep.subr.mxu0 0.0
    %364 = vmatpush1.msra.mxu0 0.0
    %365 = vmatprep.subr.mxu0 0.0
    %366 = vmatpush1.msra.mxu0 0.0
    %367 = vmatprep.subr.mxu0 0.0
    %368 = vmatpush1.msra.mxu0 0.0
    %369 = vmatprep.subr.mxu0 0.0
    %370 = vmatpush1.msra.mxu0 %v340
    %371 = vmatprep.subr.mxu0 0.0
    %372 = vmatpush1.msra.mxu0 %v339
    %373 = vmatprep.subr.mxu0 0.0
    %374 = vmatpush1.msra.mxu0 %v338
    %375 = vmatprep.subr.mxu0 0.0
    %376 = vmatpush1.msra.mxu0 %v337
    %377 = vmatprep.subr.mxu0 0.0
    %378 = vmatpush2.msra.mxu0 0.0
    %379 = vmatprep.subr.mxu0 0.0
    %380 = vmatpush2.msra.mxu0 0.0
    %381 = vmatprep.subr.mxu0 0.0
    %382 = vmatpush2.msra.mxu0 0.0
    %383 = vmatprep.subr.mxu0 0.0
    %384 = vmatpush2.msra.mxu0 0.0
    %385 = vmatprep.subr.mxu0 0.0
    %386 = vmatpush2.msra.mxu0 0.0
    %387 = vmatprep.subr.mxu0 0.0
    %388 = vmatpush2.msra.mxu0 0.0
    %389 = vmatprep.subr.mxu0 0.0
    %390 = vmatpush2.msra.mxu0 0.0
    %391 = vmatprep.subr.mxu0 0.0
    %392 = vmatpush2.msra.mxu0 0.0
    %393 = vmatprep.subr.mxu0 0.0
    %394 = vmatpush2.msra.mxu0 0.0
    %395 = vmatprep.subr.mxu0 0.0
    %396 = vmatpush2.msra.mxu0 0.0
    %397 = vmatprep.subr.mxu0 0.0
    %398 = vmatpush2.msra.mxu0 0.0
    %399 = vmatprep.subr.mxu0 0.0
    %400 = vmatpush2.msra.mxu0 0.0
    %401 = vmatprep.subr.mxu0 0.0
    %402 = vmatpush2.msra.mxu0 0.0
    %403 = vmatprep.subr.mxu0 0.0
    %404 = vmatpush2.msra.mxu0 0.0
    %405 = vmatprep.subr.mxu0 0.0
    %406 = vmatpush2.msra.mxu0 0.0
    %407 = vmatprep.subr.mxu0 0.0
    %408 = vmatpush2.msra.mxu0 0.0
    %409 = vmatprep.mubr.f32.mxu0 0.0
    %410 = vmatmul.mubr.f32.gmra.mxu0 %v343
    %v411 = vpop.f32.mrf.mxu0
    %v412 = vadd.f32 0.0, %v411
    %v413 = vpop.f32.mrf.mxu0
    %414 = vdwg.mxu0
    %v416 = vsel %vm341, %v229, 0
    %418 = vmatprep.subr.mxu0 0.0
    %419 = vmatpush1.msra.mxu0 0.0
    %420 = vmatprep.subr.mxu0 0.0
    %421 = vmatpush1.msra.mxu0 0.0
    %422 = vmatprep.subr.mxu0 0.0
    %423 = vmatpush1.msra.mxu0 0.0
    %424 = vmatprep.subr.mxu0 0.0
    %425 = vmatpush1.msra.mxu0 0.0
    %426 = vmatprep.subr.mxu0 0.0
    %427 = vmatpush1.msra.mxu0 0.0
    %428 = vmatprep.subr.mxu0 0.0
    %429 = vmatpush1.msra.mxu0 0.0
    %430 = vmatprep.subr.mxu0 0.0
    %431 = vmatpush1.msra.mxu0 0.0
    %432 = vmatprep.subr.mxu0 0.0
    %433 = vmatpush1.msra.mxu0 0.0
    %434 = vmatprep.subr.mxu0 0.0
    %435 = vmatpush1.msra.mxu0 0.0
    %436 = vmatprep.subr.mxu0 0.0
    %437 = vmatpush1.msra.mxu0 0.0
    %438 = vmatprep.subr.mxu0 0.0
    %439 = vmatpush1.msra.mxu0 0.0
    %440 = vmatprep.subr.mxu0 0.0
    %441 = vmatpush1.msra.mxu0 0.0
    %442 = vmatprep.subr.mxu0 0.0
    %443 = vmatpush1.msra.mxu0 %v336
    %444 = vmatprep.subr.mxu0 0.0
    %445 = vmatpush1.msra.mxu0 %v335
    %446 = vmatprep.subr.mxu0 0.0
    %447 = vmatpush1.msra.mxu0 %v334
    %448 = vmatprep.subr.mxu0 0.0
    %449 = vmatpush1.msra.mxu0 %v333
    %450 = vmatprep.subr.mxu0 0.0
    %451 = vmatpush2.msra.mxu0 0.0
    %452 = vmatprep.subr.mxu0 0.0
    %453 = vmatpush2.msra.mxu0 0.0
    %454 = vmatprep.subr.mxu0 0.0
    %455 = vmatpush2.msra.mxu0 0.0
    %456 = vmatprep.subr.mxu0 0.0
    %457 = vmatpush2.msra.mxu0 0.0
    %458 = vmatprep.subr.mxu0 0.0
    %459 = vmatpush2.msra.mxu0 0.0
    %460 = vmatprep.subr.mxu0 0.0
    %461 = vmatpush2.msra.mxu0 0.0
    %462 = vmatprep.subr.mxu0 0.0
    %463 = vmatpush2.msra.mxu0 0.0
    %464 = vmatprep.subr.mxu0 0.0
    %465 = vmatpush2.msra.mxu0 0.0
    %466 = vmatprep.subr.mxu0 0.0
    %467 = vmatpush2.msra.mxu0 0.0
    %468 = vmatprep.subr.mxu0 0.0
    %469 = vmatpush2.msra.mxu0 0.0
    %470 = vmatprep.subr.mxu0 0.0
    %471 = vmatpush2.msra.mxu0 0.0
    %472 = vmatprep.subr.mxu0 0.0
    %473 = vmatpush2.msra.mxu0 0.0
    %474 = vmatprep.subr.mxu0 0.0
    %475 = vmatpush2.msra.mxu0 0.0
    %476 = vmatprep.subr.mxu0 0.0
    %477 = vmatpush2.msra.mxu0 0.0
    %478 = vmatprep.subr.mxu0 0.0
    %479 = vmatpush2.msra.mxu0 0.0
    %480 = vmatprep.subr.mxu0 0.0
    %481 = vmatpush2.msra.mxu0 0.0
    %482 = vmatprep.mubr.f32.mxu0 0.0
    %483 = vmatmul.mubr.f32.gmra.mxu0 %v416
    %v484 = vpop.f32.mrf.mxu0
    %v485 = vadd.f32 %v412, %v484
    %v486 = vpop.f32.mrf.mxu0
    %487 = vdwg.mxu0
    %v488 = vld [vmem:[%s4] sm:$0x1]
    %v490 = vlaneseq
    %v491 = vshrl.u32 %v490, 7
    %v492 = vsub.s32 0, %v491
    %v493 = vrot.slane %v488, %v492
    %v495 = vadd.f32 %v485, %v493
    %v496 = vmax.f32 %v495, 0.0
    %v497 = vld [vmem:[#allocation4] sm:$0xff]
    %v498 = vld [vmem:[#allocation4 + $0x8] sm:$0xff]
    %v499 = vld [vmem:[#allocation4 + $0x10] sm:$0xff]
    %v500 = vld [vmem:[#allocation4 + $0x18] sm:$0xff]
    %v501 = vld [vmem:[%s6] sm:$0x1]
    %v503 = vlaneseq
    %v504 = vshrl.u32 %v503, 7
    %v505 = vsub.s32 0, %v504
    %v506 = vrot.slane %v501, %v505
    %v509 = vsel %vm341, %v496, 0
    %511 = vmatprep.subr.mxu0 0.0
    %512 = vmatpush1.msra.mxu0 0.0
    %513 = vmatprep.subr.mxu0 0.0
    %514 = vmatpush1.msra.mxu0 0.0
    %515 = vmatprep.subr.mxu0 0.0
    %516 = vmatpush1.msra.mxu0 0.0
    %517 = vmatprep.subr.mxu0 0.0
    %518 = vmatpush1.msra.mxu0 0.0
    %519 = vmatprep.subr.mxu0 0.0
    %520 = vmatpush1.msra.mxu0 0.0
    %521 = vmatprep.subr.mxu0 0.0
    %522 = vmatpush1.msra.mxu0 0.0
    %523 = vmatprep.subr.mxu0 0.0
    %524 = vmatpush1.msra.mxu0 0.0
    %525 = vmatprep.subr.mxu0 0.0
    %526 = vmatpush1.msra.mxu0 0.0
    %527 = vmatprep.subr.mxu0 0.0
    %528 = vmatpush1.msra.mxu0 0.0
    %529 = vmatprep.subr.mxu0 0.0
    %530 = vmatpush1.msra.mxu0 0.0
    %531 = vmatprep.subr.mxu0 0.0
    %532 = vmatpush1.msra.mxu0 0.0
    %533 = vmatprep.subr.mxu0 0.0
    %534 = vmatpush1.msra.mxu0 0.0
    %535 = vmatprep.subr.mxu0 0.0
    %536 = vmatpush1.msra.mxu0 %v500
    %537 = vmatprep.subr.mxu0 0.0
    %538 = vmatpush1.msra.mxu0 %v499
    %539 = vmatprep.subr.mxu0 0.0
    %540 = vmatpush1.msra.mxu0 %v498
    %541 = vmatprep.subr.mxu0 0.0
    %542 = vmatpush1.msra.mxu0 %v497
    %543 = vmatprep.subr.mxu0 0.0
    %544 = vmatpush2.msra.mxu0 0.0
    %545 = vmatprep.subr.mxu0 0.0
    %546 = vmatpush2.msra.mxu0 0.0
    %547 = vmatprep.subr.mxu0 0.0
    %548 = vmatpush2.msra.mxu0 0.0
    %549 = vmatprep.subr.mxu0 0.0
    %550 = vmatpush2.msra.mxu0 0.0
    %551 = vmatprep.subr.mxu0 0.0
    %552 = vmatpush2.msra.mxu0 0.0
    %553 = vmatprep.subr.mxu0 0.0
    %554 = vmatpush2.msra.mxu0 0.0
    %555 = vmatprep.subr.mxu0 0.0
    %556 = vmatpush2.msra.mxu0 0.0
    %557 = vmatprep.subr.mxu0 0.0
    %558 = vmatpush2.msra.mxu0 0.0
    %559 = vmatprep.subr.mxu0 0.0
    %560 = vmatpush2.msra.mxu0 0.0
    %561 = vmatprep.subr.mxu0 0.0
    %562 = vmatpush2.msra.mxu0 0.0
    %563 = vmatprep.subr.mxu0 0.0
    %564 = vmatpush2.msra.mxu0 0.0
    %565 = vmatprep.subr.mxu0 0.0
    %566 = vmatpush2.msra.mxu0 0.0
    %567 = vmatprep.subr.mxu0 0.0
    %568 = vmatpush2.msra.mxu0 0.0
    %569 = vmatprep.subr.mxu0 0.0
    %570 = vmatpush2.msra.mxu0 0.0
    %571 = vmatprep.subr.mxu0 0.0
    %572 = vmatpush2.msra.mxu0 0.0
    %573 = vmatprep.subr.mxu0 0.0
    %574 = vmatpush2.msra.mxu0 0.0
    %575 = vmatprep.mubr.f32.mxu0 0.0
    %576 = vmatmul.mubr.f32.gmra.mxu0 %v509
    %v577 = vpop.f32.mrf.mxu0
    %v578 = vadd.f32 %v506, %v577
    %v579 = vpop.f32.mrf.mxu0
    %580 = vdwg.mxu0
    %v581 = vmax.f32 %v578, 0.0
    %v582 = vld [vmem:[#allocation6] sm:$0xff]
    %v583 = vld [vmem:[#allocation6 + $0x8] sm:$0xff]
    %v584 = vld [vmem:[#allocation6 + $0x10] sm:$0xff]
    %v585 = vld [vmem:[#allocation6 + $0x18] sm:$0xff]
    %v586 = vld [vmem:[%s8] sm:$0x1]
    %v588 = vlaneseq
    %v589 = vshrl.u32 %v588, 7
    %v590 = vsub.s32 0, %v589
    %v591 = vrot.slane %v586, %v590
    %v594 = vsel %vm341, %v581, 0
    %596 = vmatprep.subr.mxu0 0.0
    %597 = vmatpush1.msra.mxu0 0.0
    %598 = vmatprep.subr.mxu0 0.0
    %599 = vmatpush1.msra.mxu0 0.0
    %600 = vmatprep.subr.mxu0 0.0
    %601 = vmatpush1.msra.mxu0 0.0
    %602 = vmatprep.subr.mxu0 0.0
    %603 = vmatpush1.msra.mxu0 0.0
    %604 = vmatprep.subr.mxu0 0.0
    %605 = vmatpush1.msra.mxu0 0.0
    %606 = vmatprep.subr.mxu0 0.0
    %607 = vmatpush1.msra.mxu0 0.0
    %608 = vmatprep.subr.mxu0 0.0
    %609 = vmatpush1.msra.mxu0 0.0
    %610 = vmatprep.subr.mxu0 0.0
    %611 = vmatpush1.msra.mxu0 0.0
    %612 = vmatprep.subr.mxu0 0.0
    %613 = vmatpush1.msra.mxu0 0.0
    %614 = vmatprep.subr.mxu0 0.0
    %615 = vmatpush1.msra.mxu0 0.0
    %616 = vmatprep.subr.mxu0 0.0
    %617 = vmatpush1.msra.mxu0 0.0
    %618 = vmatprep.subr.mxu0 0.0
    %619 = vmatpush1.msra.mxu0 0.0
    %620 = vmatprep.subr.mxu0 0.0
    %621 = vmatpush1.msra.mxu0 %v585
    %622 = vmatprep.subr.mxu0 0.0
    %623 = vmatpush1.msra.mxu0 %v584
    %624 = vmatprep.subr.mxu0 0.0
    %625 = vmatpush1.msra.mxu0 %v583
    %626 = vmatprep.subr.mxu0 0.0
    %627 = vmatpush1.msra.mxu0 %v582
    %628 = vmatprep.subr.mxu0 0.0
    %629 = vmatpush2.msra.mxu0 0.0
    %630 = vmatprep.subr.mxu0 0.0
    %631 = vmatpush2.msra.mxu0 0.0
    %632 = vmatprep.subr.mxu0 0.0
    %633 = vmatpush2.msra.mxu0 0.0
    %634 = vmatprep.subr.mxu0 0.0
    %635 = vmatpush2.msra.mxu0 0.0
    %636 = vmatprep.subr.mxu0 0.0
    %637 = vmatpush2.msra.mxu0 0.0
    %638 = vmatprep.subr.mxu0 0.0
    %639 = vmatpush2.msra.mxu0 0.0
    %640 = vmatprep.subr.mxu0 0.0
    %641 = vmatpush2.msra.mxu0 0.0
    %642 = vmatprep.subr.mxu0 0.0
    %643 = vmatpush2.msra.mxu0 0.0
    %644 = vmatprep.subr.mxu0 0.0
    %645 = vmatpush2.msra.mxu0 0.0
    %646 = vmatprep.subr.mxu0 0.0
    %647 = vmatpush2.msra.mxu0 0.0
    %648 = vmatprep.subr.mxu0 0.0
    %649 = vmatpush2.msra.mxu0 0.0
    %650 = vmatprep.subr.mxu0 0.0
    %651 = vmatpush2.msra.mxu0 0.0
    %652 = vmatprep.subr.mxu0 0.0
    %653 = vmatpush2.msra.mxu0 0.0
    %654 = vmatprep.subr.mxu0 0.0
    %655 = vmatpush2.msra.mxu0 0.0
    %656 = vmatprep.subr.mxu0 0.0
    %657 = vmatpush2.msra.mxu0 0.0
    %658 = vmatprep.subr.mxu0 0.0
    %659 = vmatpush2.msra.mxu0 0.0
    %660 = vmatprep.mubr.f32.mxu0 0.0
    %661 = vmatmul.mubr.f32.gmra.mxu0 %v594
    %v662 = vpop.f32.mrf.mxu0
    %v663 = vadd.f32 %v591, %v662
    %v664 = vpop.f32.mrf.mxu0
    %665 = vdwg.mxu0
    %v666 = vmax.f32 %v663, 0.0
    %v667 = vld [vmem:[%s9] sm:$0xff]
    %v668 = vld [vmem:[%s9 + $0x8] sm:$0xff]
    %v669 = vld [vmem:[%s9 + $0x10] sm:$0xff]
    %v670 = vld [vmem:[%s9 + $0x18] sm:$0xff]
    %v671 = vld [vmem:[%s10] sm:$0x1]
    %v673 = vlaneseq
    %v674 = vshrl.u32 %v673, 7
    %v675 = vsub.s32 0, %v674
    %v676 = vrot.slane %v671, %v675
    %v679 = vsel %vm341, %v666, 0
    %681 = vmatprep.subr.mxu0 0.0
    %682 = vmatpush1.msra.mxu0 0.0
    %683 = vmatprep.subr.mxu0 0.0
    %684 = vmatpush1.msra.mxu0 0.0
    %685 = vmatprep.subr.mxu0 0.0
    %686 = vmatpush1.msra.mxu0 0.0
    %687 = vmatprep.subr.mxu0 0.0
    %688 = vmatpush1.msra.mxu0 0.0
    %689 = vmatprep.subr.mxu0 0.0
    %690 = vmatpush1.msra.mxu0 0.0
    %691 = vmatprep.subr.mxu0 0.0
    %692 = vmatpush1.msra.mxu0 0.0
    %693 = vmatprep.subr.mxu0 0.0
    %694 = vmatpush1.msra.mxu0 0.0
    %695 = vmatprep.subr.mxu0 0.0
    %696 = vmatpush1.msra.mxu0 0.0
    %697 = vmatprep.subr.mxu0 0.0
    %698 = vmatpush1.msra.mxu0 0.0
    %699 = vmatprep.subr.mxu0 0.0
    %700 = vmatpush1.msra.mxu0 0.0
    %701 = vmatprep.subr.mxu0 0.0
    %702 = vmatpush1.msra.mxu0 0.0
    %703 = vmatprep.subr.mxu0 0.0
    %704 = vmatpush1.msra.mxu0 0.0
    %705 = vmatprep.subr.mxu0 0.0
    %706 = vmatpush1.msra.mxu0 %v670
    %707 = vmatprep.subr.mxu0 0.0
    %708 = vmatpush1.msra.mxu0 %v669
    %709 = vmatprep.subr.mxu0 0.0
    %710 = vmatpush1.msra.mxu0 %v668
    %711 = vmatprep.subr.mxu0 0.0
    %712 = vmatpush1.msra.mxu0 %v667
    %713 = vmatprep.subr.mxu0 0.0
    %714 = vmatpush2.msra.mxu0 0.0
    %715 = vmatprep.subr.mxu0 0.0
    %716 = vmatpush2.msra.mxu0 0.0
    %717 = vmatprep.subr.mxu0 0.0
    %718 = vmatpush2.msra.mxu0 0.0
    %719 = vmatprep.subr.mxu0 0.0
    %720 = vmatpush2.msra.mxu0 0.0
    %721 = vmatprep.subr.mxu0 0.0
    %722 = vmatpush2.msra.mxu0 0.0
    %723 = vmatprep.subr.mxu0 0.0
    %724 = vmatpush2.msra.mxu0 0.0
    %725 = vmatprep.subr.mxu0 0.0
    %726 = vmatpush2.msra.mxu0 0.0
    %727 = vmatprep.subr.mxu0 0.0
    %728 = vmatpush2.msra.mxu0 0.0
    %729 = vmatprep.subr.mxu0 0.0
    %730 = vmatpush2.msra.mxu0 0.0
    %731 = vmatprep.subr.mxu0 0.0
    %732 = vmatpush2.msra.mxu0 0.0
    %733 = vmatprep.subr.mxu0 0.0
    %734 = vmatpush2.msra.mxu0 0.0
    %735 = vmatprep.subr.mxu0 0.0
    %736 = vmatpush2.msra.mxu0 0.0
    %737 = vmatprep.subr.mxu0 0.0
    %738 = vmatpush2.msra.mxu0 0.0
    %739 = vmatprep.subr.mxu0 0.0
    %740 = vmatpush2.msra.mxu0 0.0
    %741 = vmatprep.subr.mxu0 0.0
    %742 = vmatpush2.msra.mxu0 0.0
    %743 = vmatprep.subr.mxu0 0.0
    %744 = vmatpush2.msra.mxu0 0.0
    %745 = vmatprep.mubr.f32.mxu0 0.0
    %746 = vmatmul.mubr.f32.gmra.mxu0 %v679
    %v747 = vpop.f32.mrf.mxu0
    %v748 = vadd.f32 %v676, %v747
    %v749 = vpop.f32.mrf.mxu0
    %750 = vdwg.mxu0
    %vm751 = vcmask 23552
    %752 = vst.msk [vmem:[%s11] sm:$0xff] %vm751, %v748
    // Predicated region
    $region58: #{tpu_custom_call.1} parent=1 // pred_check
      _
    $region59: #{tpu_custom_call.1} parent=1 // pred_check_branch
      %754 = sbr.rel (0) target = $region61
    $region60: #{tpu_custom_call.1} parent=1 // pred_region
      _
    $region61: #{tpu_custom_call.1} parent=1 // pred_fallthru
      _
    // Predicated region
    $region62: #{tpu_custom_call.1} parent=1 // pred_check
      _
    $region63: #{tpu_custom_call.1} parent=1 // pred_check_branch
      %756 = sbr.rel (0) target = $region65
    $region64: #{tpu_custom_call.1} parent=1 // pred_region
      _
    $region65: #{tpu_custom_call.1} parent=1 // pred_fallthru
      _
    %757 = vsyncpa [#allocation3], 1
    %758 = vsyncpa [#allocation5], 1

</llo_original>
